<compile_context>
chip_gen: v7x
topology: tpu7x:2x2x1
jax: 0.10.0
libtpu: 0.0.40
codegen_flags: <defaults>
</compile_context>

<pallas_src>
import jax
import jax.numpy as jnp
from jax.experimental import pallas as pl
from jax.experimental.pallas import tpu as pltpu

# ---------------- model hyper-params (args.*) ----------------
EMB_DIM = 32          # args.emb_dim
NUM_LAYER = 2         # args.num_layer (must be >= 2)
NUM_ATOM_TYPE = 120
NUM_CHIRALITY = 3
NUM_BOND_TYPE = 6
NUM_BOND_DIR = 3
BN_EPS = 1e-5
OUT_LANES = 128       # lane-dense output width (sliced to 2 in the wrapper)
# dropout_ratio = 0  -> dropout is the identity and is omitted


def _vmem_specs(k):
    return [pl.BlockSpec(memory_space=pltpu.MemorySpace.VMEM) for _ in range(k)]


# ---------------- fused forward kernel ---------------------------------------------------
def fused_mask_kernel(h0_ref, adj_ref, w1s_ref, w2s_ref, wfc_ref,
                      pool_ref, pool_t_ref, pf_ref, out_ref):
    n, d = h0_ref.shape
    num_layer = w1s_ref.shape[0]
    s_max = pool_ref.shape[0]

    # static row offsets into the packed f32 parameter buffer (must match wrapper)
    r_gum = num_layer * n          # gumbel noise rows          (s_max, 2)
    r_b2 = r_gum + s_max           # per-layer b2 rows          (L, D)
    r_gamma = r_b2 + num_layer     # per-layer BN gamma rows    (L, D)
    r_beta = r_gamma + num_layer   # per-layer BN beta rows     (L, D)
    r_bfc = r_beta + num_layer     # fc bias row                (1, 2)

    h = h0_ref[...]                # (N, D)  bf16 initial node embeddings
    adj = adj_ref[...]             # (N, N)  bf16 adjacency with self-loops

    for l in range(num_layer):
        # GIN aggregation; the edge-embedding term is pre-folded into bias1 (wrapper)
        aggr = jnp.dot(adj, h, preferred_element_type=jnp.float32)            # (N, D) f32
        bias1 = pf_ref[l * n:(l + 1) * n, :]                                  # (N, 2D) f32
        # GIN update MLP: Linear(D, 2D) -> ReLU -> Linear(2D, D)
        h1 = jnp.dot(aggr.astype(jnp.bfloat16), w1s_ref[l],
                     preferred_element_type=jnp.float32) + bias1
        h1 = jnp.maximum(h1, 0.0)
        h2 = jnp.dot(h1.astype(jnp.bfloat16), w2s_ref[l],
                     preferred_element_type=jnp.float32)
        h2 = h2 + pf_ref[r_b2 + l:r_b2 + l + 1, 0:d]
        # BatchNorm1d, training-mode batch statistics (biased variance), single pass
        mean = jnp.mean(h2, axis=0, keepdims=True)
        var = jnp.mean(h2 * h2, axis=0, keepdims=True) - mean * mean
        hn = (h2 - mean) * jax.lax.rsqrt(var + BN_EPS)
        hn = hn * pf_ref[r_gamma + l:r_gamma + l + 1, 0:d] \
            + pf_ref[r_beta + l:r_beta + l + 1, 0:d]
        if l != num_layer - 1:
            hn = jnp.maximum(hn, 0.0)
        # dropout(ratio=0) == identity
        h = hn.astype(jnp.bfloat16)

    # subgraph add-pool + FC, reordered:  logits = pool @ (h @ wfc) + bfc
    hwfc = jnp.dot(h, wfc_ref[...], preferred_element_type=jnp.float32)       # (N, 2)
    logits = jnp.dot(pool_ref[...], hwfc.astype(jnp.bfloat16),
                     preferred_element_type=jnp.float32)                      # (S, 2)
    y = logits + pf_ref[r_bfc:r_bfc + 1, 0:2] + pf_ref[r_gum:r_gum + s_max, 0:2]

    # gumbel_softmax(tau=1, hard=True): forward value is argmax one-hot of logits+gumbel.
    keep = (y[:, 0:1] >= y[:, 1:2]).astype(jnp.bfloat16)                      # (S, 1)
    # per-node class-0 probability via one-hot gather:  p0 = pool_t @ keep
    p0 = jnp.dot(pool_t_ref[...], keep, preferred_element_type=jnp.float32)   # (N, 1)

    # lane-dense (N, 128) output: lane0 = p0, lane1 = 1 - p0, rest 0
    lane = jax.lax.broadcasted_iota(jnp.int32, (n, OUT_LANES), 1)
    out_ref[...] = jnp.where(lane == 0, p0, jnp.where(lane == 1, 1.0 - p0, 0.0))


def fused_mask_forward(h0, adj, w1s, w2s, wfc, pool, pool_t, pf):
    n = h0.shape[0]
    return pl.pallas_call(
        fused_mask_kernel,
        out_shape=jax.ShapeDtypeStruct((n, OUT_LANES), jnp.float32),
        in_specs=_vmem_specs(8),
        out_specs=pl.BlockSpec(memory_space=pltpu.MemorySpace.VMEM),
        compiler_params=pltpu.CompilerParams(vmem_limit_bytes=32 * 1024 * 1024),
    )(h0, adj, w1s, w2s, wfc, pool, pool_t, pf)


# ---------------- parameter init (deterministic, synthetic) ------------------------------
def xavier_uniform(key, shape):
    fan_in, fan_out = shape[0], shape[1]
    a = (6.0 / (fan_in + fan_out)) ** 0.5
    return jax.random.uniform(key, shape, jnp.float32, -a, a)


def linear_init(key, fan_in, fan_out):
    kw, kb = jax.random.split(key)
    bound = 1.0 / (fan_in ** 0.5)
    w = jax.random.uniform(kw, (fan_in, fan_out), jnp.float32, -bound, bound)
    b = jax.random.uniform(kb, (1, fan_out), jnp.float32, -bound, bound)
    return w, b


def init_params(key):
    keys = jax.random.split(key, 4 + 4 * NUM_LAYER)
    params = {
        "x_emb1": xavier_uniform(keys[0], (NUM_ATOM_TYPE, EMB_DIM)),
        "x_emb2": xavier_uniform(keys[1], (NUM_CHIRALITY, EMB_DIM)),
        "layers": [],
    }
    for l in range(NUM_LAYER):
        k0, k1, k2, k3 = keys[2 + 4 * l: 6 + 4 * l]
        w1, b1 = linear_init(k2, EMB_DIM, 2 * EMB_DIM)
        w2, b2 = linear_init(k3, 2 * EMB_DIM, EMB_DIM)
        params["layers"].append({
            "edge_emb1": xavier_uniform(k0, (NUM_BOND_TYPE, EMB_DIM)),
            "edge_emb2": xavier_uniform(k1, (NUM_BOND_DIR, EMB_DIM)),
            "w1": w1, "b1": b1, "w2": w2, "b2": b2,
            "gamma": jnp.ones((1, EMB_DIM), jnp.float32),
            "beta": jnp.zeros((1, EMB_DIM), jnp.float32),
        })
    wfc, bfc = linear_init(keys[-2], EMB_DIM, 2)
    params["fc_w"], params["fc_b"] = wfc, bfc
    return params, keys[-1]


# ---------------- forward (O(E) glue in XLA, fused hot path in Pallas) --------------------
def sub_advers_mask_forward(params, x, edge_index, edge_attr, atom_subgraph, gumbel_key):
    n = x.shape[0]
    idx_dtype = edge_index.dtype
    layers = params["layers"]
    num_layer = len(layers)

    # GINConv.forward: add self-loops; self-loop edge_attr = [4, 0]
    loops = jnp.arange(n, dtype=idx_dtype)
    src = jnp.concatenate([edge_index[0], loops])
    dst = jnp.concatenate([edge_index[1], loops])
    bond = jnp.concatenate([edge_attr[:, 0], jnp.full((n,), 4, edge_attr.dtype)])
    bdir = jnp.concatenate([edge_attr[:, 1], jnp.zeros((n,), edge_attr.dtype)])

    # (N,N) adjacency with self-loops (bf16: exact for small integer counts)
    adj = jnp.zeros((n, n), jnp.float32).at[dst, src].add(1.0).astype(jnp.bfloat16)

    # (N,9) per-destination bond/dir counts, consumed ONLY in XLA for the W1 fold
    dst_attr = (jnp.zeros((n, NUM_BOND_TYPE + NUM_BOND_DIR), jnp.float32)
                .at[dst, bond].add(1.0)
                .at[dst, NUM_BOND_TYPE + bdir].add(1.0))

    # initial node embeddings via row gather (no one-hot matmul in the kernel)
    h0 = (params["x_emb1"][x[:, 0]] + params["x_emb2"][x[:, 1]]).astype(jnp.bfloat16)

    # stacked bf16 weights
    w1s = jnp.stack([lp["w1"] for lp in layers]).astype(jnp.bfloat16)   # (L, D, 2D)
    w2s = jnp.stack([lp["w2"] for lp in layers]).astype(jnp.bfloat16)   # (L, 2D, D)
    wfc = params["fc_w"].astype(jnp.bfloat16)                           # (D, 2)

    # fold the edge-embedding term through W1:  bias1_l = dst_attr @ E_l @ W1_l + b1_l
    bias1s = jnp.stack([
        dst_attr @ jnp.concatenate([lp["edge_emb1"], lp["edge_emb2"]], axis=0) @ lp["w1"]
        + lp["b1"]
        for lp in layers])                                              # (L, N, 2D) f32
    b2s = jnp.concatenate([lp["b2"] for lp in layers], axis=0)          # (L, D)
    gammas = jnp.concatenate([lp["gamma"] for lp in layers], axis=0)    # (L, D)
    betas = jnp.concatenate([lp["beta"] for lp in layers], axis=0)      # (L, D)

    # torch.unique(..., return_inverse=True) relabel with a STATIC size bound (S <= N):
    # no device->host sync, no shape-dependent recompiles.
    s_max = n
    _, new_sub = jnp.unique(atom_subgraph, return_inverse=True, size=s_max)
    new_sub = new_sub.reshape(-1)
    pool_t = jax.nn.one_hot(new_sub, s_max, dtype=jnp.bfloat16)         # (N, S)
    pool = pool_t.T                                                     # (S, N)

    # gumbel noise sampled in JAX (deterministic key), consumed inside the kernel
    gumbel = jax.random.gumbel(gumbel_key, (s_max, 2), jnp.float32)

    # pack all tiny f32 parameters into ONE buffer (static row offsets, see kernel)
    width = 2 * EMB_DIM
    r_gum = num_layer * n
    r_b2 = r_gum + s_max
    r_gamma = r_b2 + num_layer
    r_beta = r_gamma + num_layer
    r_bfc = r_beta + num_layer
    total_rows = ((r_bfc + 1 + 7) // 8) * 8
    pf = jnp.zeros((total_rows, width), jnp.float32)
    pf = pf.at[0:r_gum, :].set(bias1s.reshape(num_layer * n, width))
    pf = pf.at[r_gum:r_gum + s_max, 0:2].set(gumbel)
    pf = pf.at[r_b2:r_gamma, 0:EMB_DIM].set(b2s)
    pf = pf.at[r_gamma:r_beta, 0:EMB_DIM].set(gammas)
    pf = pf.at[r_beta:r_bfc, 0:EMB_DIM].set(betas)
    pf = pf.at[r_bfc, 0:2].set(params["fc_b"].reshape(2))

    out128 = fused_mask_forward(h0, adj, w1s, w2s, wfc, pool, pool_t, pf)
    return out128[:, :2]


if __name__ == "__main__":
    key = jax.random.PRNGKey(0)
    params, gumbel_key = init_params(key)

    # small synthetic graph batch
    N, E = 16, 20
    k1, k2, k3, k4, k5, k6 = jax.random.split(jax.random.PRNGKey(0), 6)
    x = jnp.stack([jax.random.randint(k1, (N,), 0, NUM_ATOM_TYPE),
                   jax.random.randint(k2, (N,), 0, NUM_CHIRALITY)], axis=1).astype(jnp.int32)
    edge_index = jax.random.randint(k3, (2, E), 0, N).astype(jnp.int32)
    edge_attr = jnp.stack([jax.random.randint(k4, (E,), 0, NUM_BOND_TYPE),
                           jax.random.randint(k5, (E,), 0, NUM_BOND_DIR)], axis=1).astype(jnp.int32)
    # non-contiguous subgraph ids to exercise the unique/relabel path
    subgraph_values = jnp.array([3, 7, 11, 2], dtype=jnp.int32)
    atom_subgraph = subgraph_values[jax.random.randint(k6, (N,), 0, 4)]

    node_prob = sub_advers_mask_forward(params, x, edge_index, edge_attr,
                                        atom_subgraph, gumbel_key)
    node_prob = jax.block_until_ready(node_prob)
    assert node_prob.shape == (N, 2)
    assert bool(jnp.all(jnp.sum(node_prob, axis=-1) == 1.0))
    assert bool(jnp.all((node_prob == 0.0) | (node_prob == 1.0)))
    print("KERNEL_OK")
</pallas_src>

<mosaic_0001>
module attributes {stable_mosaic.version = 11 : i64} {
  func.func @fused_mask_kernel(%arg0: memref<16x32xbf16, #tpu.memory_space<vmem>>, %arg1: memref<16x16xbf16, #tpu.memory_space<vmem>>, %arg2: memref<2x32x64xbf16, #tpu.memory_space<vmem>>, %arg3: memref<2x64x32xbf16, #tpu.memory_space<vmem>>, %arg4: memref<32x2xbf16, #tpu.memory_space<vmem>>, %arg5: memref<16x16xbf16, #tpu.memory_space<vmem>>, %arg6: memref<16x16xbf16, #tpu.memory_space<vmem>>, %arg7: memref<56x64xf32, #tpu.memory_space<vmem>>, %arg8: memref<16x128xf32, #tpu.memory_space<vmem>>) attributes {dimension_semantics = [], scalar_prefetch = 0 : i64, scratch_operands = 0 : i64, tpu.core_type = #tpu.core_type<tc>} {
    %c0 = arith.constant 0 : index
    %c0_0 = arith.constant 0 : index
    %0 = vector.load %arg0[%c0, %c0_0] : memref<16x32xbf16, #tpu.memory_space<vmem>>, vector<16x32xbf16>
    %c0_1 = arith.constant 0 : index
    %c0_2 = arith.constant 0 : index
    %1 = vector.load %arg1[%c0_1, %c0_2] : memref<16x16xbf16, #tpu.memory_space<vmem>>, vector<16x16xbf16>
    %cst = arith.constant dense<0.000000e+00> : vector<16x32xf32>
    %2 = tpu.matmul %1, %0, %cst {dimension_numbers = #tpu.dot_dimension_numbers<[1], [0], [0], [1], [0, 0, 1, 1], [], []>} : vector<16x16xbf16>, vector<16x32xbf16>, vector<16x32xf32> -> vector<16x32xf32>
    %c0_3 = arith.constant 0 : index
    %c0_4 = arith.constant 0 : index
    %3 = vector.load %arg7[%c0_3, %c0_4] : memref<56x64xf32, #tpu.memory_space<vmem>>, vector<16x64xf32>
    %4 = arith.truncf %2 : vector<16x32xf32> to vector<16x32xbf16>
    %c0_5 = arith.constant 0 : index
    %c0_6 = arith.constant 0 : index
    %c0_7 = arith.constant 0 : index
    %5 = vector.load %arg2[%c0_5, %c0_6, %c0_7] : memref<2x32x64xbf16, #tpu.memory_space<vmem>>, vector<1x32x64xbf16>
    %6 = vector.shape_cast %5 : vector<1x32x64xbf16> to vector<32x64xbf16>
    %cst_8 = arith.constant dense<0.000000e+00> : vector<16x64xf32>
    %7 = tpu.matmul %4, %6, %cst_8 {dimension_numbers = #tpu.dot_dimension_numbers<[1], [0], [0], [1], [0, 0, 1, 1], [], []>} : vector<16x32xbf16>, vector<32x64xbf16>, vector<16x64xf32> -> vector<16x64xf32>
    %8 = arith.addf %7, %3 : vector<16x64xf32>
    %cst_9 = arith.constant 0.000000e+00 : f32
    %9 = vector.broadcast %cst_9 : f32 to vector<16x64xf32>
    %10 = arith.maximumf %8, %9 : vector<16x64xf32>
    %11 = arith.truncf %10 : vector<16x64xf32> to vector<16x64xbf16>
    %c0_10 = arith.constant 0 : index
    %c0_11 = arith.constant 0 : index
    %c0_12 = arith.constant 0 : index
    %12 = vector.load %arg3[%c0_10, %c0_11, %c0_12] : memref<2x64x32xbf16, #tpu.memory_space<vmem>>, vector<1x64x32xbf16>
    %13 = vector.shape_cast %12 : vector<1x64x32xbf16> to vector<64x32xbf16>
    %cst_13 = arith.constant dense<0.000000e+00> : vector<16x32xf32>
    %14 = tpu.matmul %11, %13, %cst_13 {dimension_numbers = #tpu.dot_dimension_numbers<[1], [0], [0], [1], [0, 0, 1, 1], [], []>} : vector<16x64xbf16>, vector<64x32xbf16>, vector<16x32xf32> -> vector<16x32xf32>
    %c48 = arith.constant 48 : index
    %c0_14 = arith.constant 0 : index
    %15 = vector.load %arg7[%c48, %c0_14] : memref<56x64xf32, #tpu.memory_space<vmem>>, vector<1x32xf32>
    %16 = vector.broadcast %15 : vector<1x32xf32> to vector<16x32xf32>
    %17 = arith.addf %14, %16 : vector<16x32xf32>
    %cst_15 = arith.constant dense<0.000000e+00> : vector<32xf32>
    %18 = vector.multi_reduction <add>, %17, %cst_15 [0] : vector<16x32xf32> to vector<32xf32>
    %19 = vector.shape_cast %18 : vector<32xf32> to vector<1x32xf32>
    %cst_16 = arith.constant 1.600000e+01 : f32
    %20 = vector.broadcast %cst_16 : f32 to vector<1x32xf32>
    %21 = arith.divf %19, %20 : vector<1x32xf32>
    %22 = arith.mulf %17, %17 : vector<16x32xf32>
    %cst_17 = arith.constant dense<0.000000e+00> : vector<32xf32>
    %23 = vector.multi_reduction <add>, %22, %cst_17 [0] : vector<16x32xf32> to vector<32xf32>
    %24 = vector.shape_cast %23 : vector<32xf32> to vector<1x32xf32>
    %cst_18 = arith.constant 1.600000e+01 : f32
    %25 = vector.broadcast %cst_18 : f32 to vector<1x32xf32>
    %26 = arith.divf %24, %25 : vector<1x32xf32>
    %27 = arith.mulf %21, %21 : vector<1x32xf32>
    %28 = arith.subf %26, %27 : vector<1x32xf32>
    %29 = vector.broadcast %21 : vector<1x32xf32> to vector<16x32xf32>
    %30 = arith.subf %17, %29 : vector<16x32xf32>
    %cst_19 = arith.constant 9.99999974E-6 : f32
    %31 = vector.broadcast %cst_19 : f32 to vector<1x32xf32>
    %32 = arith.addf %28, %31 : vector<1x32xf32>
    %33 = math.rsqrt %32 : vector<1x32xf32>
    %34 = vector.broadcast %33 : vector<1x32xf32> to vector<16x32xf32>
    %35 = arith.mulf %30, %34 : vector<16x32xf32>
    %c50 = arith.constant 50 : index
    %c0_20 = arith.constant 0 : index
    %36 = vector.load %arg7[%c50, %c0_20] : memref<56x64xf32, #tpu.memory_space<vmem>>, vector<1x32xf32>
    %37 = vector.broadcast %36 : vector<1x32xf32> to vector<16x32xf32>
    %38 = arith.mulf %35, %37 : vector<16x32xf32>
    %c52 = arith.constant 52 : index
    %c0_21 = arith.constant 0 : index
    %39 = vector.load %arg7[%c52, %c0_21] : memref<56x64xf32, #tpu.memory_space<vmem>>, vector<1x32xf32>
    %40 = vector.broadcast %39 : vector<1x32xf32> to vector<16x32xf32>
    %41 = arith.addf %38, %40 : vector<16x32xf32>
    %cst_22 = arith.constant 0.000000e+00 : f32
    %42 = vector.broadcast %cst_22 : f32 to vector<16x32xf32>
    %43 = arith.maximumf %41, %42 : vector<16x32xf32>
    %44 = arith.truncf %43 : vector<16x32xf32> to vector<16x32xbf16>
    %cst_23 = arith.constant dense<0.000000e+00> : vector<16x32xf32>
    %45 = tpu.matmul %1, %44, %cst_23 {dimension_numbers = #tpu.dot_dimension_numbers<[1], [0], [0], [1], [0, 0, 1, 1], [], []>} : vector<16x16xbf16>, vector<16x32xbf16>, vector<16x32xf32> -> vector<16x32xf32>
    %c16 = arith.constant 16 : index
    %c0_24 = arith.constant 0 : index
    %46 = vector.load %arg7[%c16, %c0_24] : memref<56x64xf32, #tpu.memory_space<vmem>>, vector<16x64xf32>
    %47 = arith.truncf %45 : vector<16x32xf32> to vector<16x32xbf16>
    %c1 = arith.constant 1 : index
    %c0_25 = arith.constant 0 : index
    %c0_26 = arith.constant 0 : index
    %48 = vector.load %arg2[%c1, %c0_25, %c0_26] : memref<2x32x64xbf16, #tpu.memory_space<vmem>>, vector<1x32x64xbf16>
    %49 = vector.shape_cast %48 : vector<1x32x64xbf16> to vector<32x64xbf16>
    %cst_27 = arith.constant dense<0.000000e+00> : vector<16x64xf32>
    %50 = tpu.matmul %47, %49, %cst_27 {dimension_numbers = #tpu.dot_dimension_numbers<[1], [0], [0], [1], [0, 0, 1, 1], [], []>} : vector<16x32xbf16>, vector<32x64xbf16>, vector<16x64xf32> -> vector<16x64xf32>
    %51 = arith.addf %50, %46 : vector<16x64xf32>
    %cst_28 = arith.constant 0.000000e+00 : f32
    %52 = vector.broadcast %cst_28 : f32 to vector<16x64xf32>
    %53 = arith.maximumf %51, %52 : vector<16x64xf32>
    %54 = arith.truncf %53 : vector<16x64xf32> to vector<16x64xbf16>
    %c1_29 = arith.constant 1 : index
    %c0_30 = arith.constant 0 : index
    %c0_31 = arith.constant 0 : index
    %55 = vector.load %arg3[%c1_29, %c0_30, %c0_31] : memref<2x64x32xbf16, #tpu.memory_space<vmem>>, vector<1x64x32xbf16>
    %56 = vector.shape_cast %55 : vector<1x64x32xbf16> to vector<64x32xbf16>
    %cst_32 = arith.constant dense<0.000000e+00> : vector<16x32xf32>
    %57 = tpu.matmul %54, %56, %cst_32 {dimension_numbers = #tpu.dot_dimension_numbers<[1], [0], [0], [1], [0, 0, 1, 1], [], []>} : vector<16x64xbf16>, vector<64x32xbf16>, vector<16x32xf32> -> vector<16x32xf32>
    %c49 = arith.constant 49 : index
    %c0_33 = arith.constant 0 : index
    %58 = vector.load %arg7[%c49, %c0_33] : memref<56x64xf32, #tpu.memory_space<vmem>>, vector<1x32xf32>
    %59 = vector.broadcast %58 : vector<1x32xf32> to vector<16x32xf32>
    %60 = arith.addf %57, %59 : vector<16x32xf32>
    %cst_34 = arith.constant dense<0.000000e+00> : vector<32xf32>
    %61 = vector.multi_reduction <add>, %60, %cst_34 [0] : vector<16x32xf32> to vector<32xf32>
    %62 = vector.shape_cast %61 : vector<32xf32> to vector<1x32xf32>
    %cst_35 = arith.constant 1.600000e+01 : f32
    %63 = vector.broadcast %cst_35 : f32 to vector<1x32xf32>
    %64 = arith.divf %62, %63 : vector<1x32xf32>
    %65 = arith.mulf %60, %60 : vector<16x32xf32>
    %cst_36 = arith.constant dense<0.000000e+00> : vector<32xf32>
    %66 = vector.multi_reduction <add>, %65, %cst_36 [0] : vector<16x32xf32> to vector<32xf32>
    %67 = vector.shape_cast %66 : vector<32xf32> to vector<1x32xf32>
    %cst_37 = arith.constant 1.600000e+01 : f32
    %68 = vector.broadcast %cst_37 : f32 to vector<1x32xf32>
    %69 = arith.divf %67, %68 : vector<1x32xf32>
    %70 = arith.mulf %64, %64 : vector<1x32xf32>
    %71 = arith.subf %69, %70 : vector<1x32xf32>
    %72 = vector.broadcast %64 : vector<1x32xf32> to vector<16x32xf32>
    %73 = arith.subf %60, %72 : vector<16x32xf32>
    %cst_38 = arith.constant 9.99999974E-6 : f32
    %74 = vector.broadcast %cst_38 : f32 to vector<1x32xf32>
    %75 = arith.addf %71, %74 : vector<1x32xf32>
    %76 = math.rsqrt %75 : vector<1x32xf32>
    %77 = vector.broadcast %76 : vector<1x32xf32> to vector<16x32xf32>
    %78 = arith.mulf %73, %77 : vector<16x32xf32>
    %c51 = arith.constant 51 : index
    %c0_39 = arith.constant 0 : index
    %79 = vector.load %arg7[%c51, %c0_39] : memref<56x64xf32, #tpu.memory_space<vmem>>, vector<1x32xf32>
    %80 = vector.broadcast %79 : vector<1x32xf32> to vector<16x32xf32>
    %81 = arith.mulf %78, %80 : vector<16x32xf32>
    %c53 = arith.constant 53 : index
    %c0_40 = arith.constant 0 : index
    %82 = vector.load %arg7[%c53, %c0_40] : memref<56x64xf32, #tpu.memory_space<vmem>>, vector<1x32xf32>
    %83 = vector.broadcast %82 : vector<1x32xf32> to vector<16x32xf32>
    %84 = arith.addf %81, %83 : vector<16x32xf32>
    %85 = arith.truncf %84 : vector<16x32xf32> to vector<16x32xbf16>
    %c0_41 = arith.constant 0 : index
    %c0_42 = arith.constant 0 : index
    %86 = vector.load %arg4[%c0_41, %c0_42] : memref<32x2xbf16, #tpu.memory_space<vmem>>, vector<32x2xbf16>
    %cst_43 = arith.constant dense<0.000000e+00> : vector<16x2xf32>
    %87 = tpu.matmul %85, %86, %cst_43 {dimension_numbers = #tpu.dot_dimension_numbers<[1], [0], [0], [1], [0, 0, 1, 1], [], []>} : vector<16x32xbf16>, vector<32x2xbf16>, vector<16x2xf32> -> vector<16x2xf32>
    %c0_44 = arith.constant 0 : index
    %c0_45 = arith.constant 0 : index
    %88 = vector.load %arg5[%c0_44, %c0_45] : memref<16x16xbf16, #tpu.memory_space<vmem>>, vector<16x16xbf16>
    %89 = arith.truncf %87 : vector<16x2xf32> to vector<16x2xbf16>
    %cst_46 = arith.constant dense<0.000000e+00> : vector<16x2xf32>
    %90 = tpu.matmul %88, %89, %cst_46 {dimension_numbers = #tpu.dot_dimension_numbers<[1], [0], [0], [1], [0, 0, 1, 1], [], []>} : vector<16x16xbf16>, vector<16x2xbf16>, vector<16x2xf32> -> vector<16x2xf32>
    %c54 = arith.constant 54 : index
    %c0_47 = arith.constant 0 : index
    %91 = vector.load %arg7[%c54, %c0_47] : memref<56x64xf32, #tpu.memory_space<vmem>>, vector<1x2xf32>
    %92 = vector.broadcast %91 : vector<1x2xf32> to vector<16x2xf32>
    %93 = arith.addf %90, %92 : vector<16x2xf32>
    %c32 = arith.constant 32 : index
    %c0_48 = arith.constant 0 : index
    %94 = vector.load %arg7[%c32, %c0_48] : memref<56x64xf32, #tpu.memory_space<vmem>>, vector<16x2xf32>
    %95 = arith.addf %93, %94 : vector<16x2xf32>
    %96 = vector.extract_strided_slice %95 {offsets = [0, 0], sizes = [16, 1], strides = [1, 1]} : vector<16x2xf32> to vector<16x1xf32>
    %97 = vector.extract_strided_slice %95 {offsets = [0, 1], sizes = [16, 1], strides = [1, 1]} : vector<16x2xf32> to vector<16x1xf32>
    %98 = arith.cmpf oge, %96, %97 : vector<16x1xf32>
    %99 = arith.extui %98 : vector<16x1xi1> to vector<16x1xi32>
    %100 = arith.sitofp %99 : vector<16x1xi32> to vector<16x1xf32>
    %101 = arith.truncf %100 : vector<16x1xf32> to vector<16x1xbf16>
    %c0_49 = arith.constant 0 : index
    %c0_50 = arith.constant 0 : index
    %102 = vector.load %arg6[%c0_49, %c0_50] : memref<16x16xbf16, #tpu.memory_space<vmem>>, vector<16x16xbf16>
    %cst_51 = arith.constant dense<0.000000e+00> : vector<16x1xf32>
    %103 = tpu.matmul %102, %101, %cst_51 {dimension_numbers = #tpu.dot_dimension_numbers<[1], [0], [0], [1], [0, 0, 1, 1], [], []>} : vector<16x16xbf16>, vector<16x1xbf16>, vector<16x1xf32> -> vector<16x1xf32>
    %104 = tpu.iota {dimensions = array<i32: 1>} : vector<16x128xi32>
    %c0_i32 = arith.constant 0 : i32
    %105 = vector.broadcast %c0_i32 : i32 to vector<16x128xi32>
    %106 = arith.cmpi eq, %104, %105 : vector<16x128xi32>
    %c1_i32 = arith.constant 1 : i32
    %107 = vector.broadcast %c1_i32 : i32 to vector<16x128xi32>
    %108 = arith.cmpi eq, %104, %107 : vector<16x128xi32>
    %cst_52 = arith.constant 1.000000e+00 : f32
    %109 = vector.broadcast %cst_52 : f32 to vector<16x1xf32>
    %110 = arith.subf %109, %103 : vector<16x1xf32>
    %cst_53 = arith.constant 0.000000e+00 : f32
    %111 = vector.shape_cast %110 : vector<16x1xf32> to vector<16x1xf32>
    %112 = vector.broadcast %111 : vector<16x1xf32> to vector<16x128xf32>
    %113 = vector.broadcast %cst_53 : f32 to vector<16x128xf32>
    %114 = arith.select %108, %112, %113 : vector<16x128xi1>, vector<16x128xf32>
    %115 = vector.shape_cast %103 : vector<16x1xf32> to vector<16x1xf32>
    %116 = vector.broadcast %115 : vector<16x1xf32> to vector<16x128xf32>
    %117 = arith.select %106, %116, %114 : vector<16x128xi1>, vector<16x128xf32>
    %c0_54 = arith.constant 0 : index
    %c0_55 = arith.constant 0 : index
    %118 = vector.load %arg8[%c0_54, %c0_55] : memref<16x128xf32, #tpu.memory_space<vmem>>, vector<16x128xf32>
    tpu.vector_store %arg8[%c0_54, %c0_55], %117 {strides = array<i32>} : memref<16x128xf32, #tpu.memory_space<vmem>>, vector<16x128xf32>,
    return
  }
}

</mosaic_0001>

<llo_original>
// kernel: tpu_custom_call.1
$region0: #{tpu_custom_call.1}
  #allocation0 [shape = 'u32[]', space=smem, size = 0x4, offset = 0x4, fixed_abs, tag = 'smem constant byte address 0x4 - core index']
  #allocation1 [shape = 'u32[144,128]{1,0:T(1,128)}', space=vmem, size = 0x12000, scoped, tag = 'internal scratch']
  %s0 = inlined_call_operand.vmem [shape: bf16[16,32], index: 0, kind: input, shape index: {}]
  %s1 = inlined_call_operand.vmem [shape: bf16[16,16], index: 1, kind: input, shape index: {}]
  %s2 = inlined_call_operand.vmem [shape: bf16[2,32,64], index: 2, kind: input, shape index: {}]
  %s3 = inlined_call_operand.vmem [shape: bf16[2,64,32], index: 3, kind: input, shape index: {}]
  %s4 = inlined_call_operand.vmem [shape: bf16[32,2], index: 4, kind: input, shape index: {}]
  %s5 = inlined_call_operand.vmem [shape: bf16[16,16], index: 5, kind: input, shape index: {}]
  %s6 = inlined_call_operand.vmem [shape: bf16[16,16], index: 6, kind: input, shape index: {}]
  %s7 = inlined_call_operand.vmem [shape: f32[56,64], index: 7, kind: input, shape index: {}]
  %s8 = inlined_call_operand.hbm [shape: f32[16,128], index: 8, kind: output, shape index: {}]
  %s9 = sld [smem:[#allocation0]]
  $region42: #{tpu_custom_call.1} parent=0
    _
  %s11 = ssub.s32 1, %s9
  %s12 = scalar_select 0, %s11, %s9
  $region1: #{tpu_custom_call.1} parent=0
    #allocation2 [shape = 'u8[8192]{0}', space=vmem, size = 0x2000, scoped, tag = 'output window, operand 0, single buffered']
    #allocation3 [shape = 's32[1]{0}', space=sflag, size = 0x4, scoped, tag = 'scoped memory for tpu_custom_call.1']
    %13 = vsyncpa [#allocation3], 0
    // Predicated region
    $region2: #{tpu_custom_call.1} parent=1 // pred_check
      _
    $region3: #{tpu_custom_call.1} parent=1 // pred_check_branch
      %15 = sbr.rel (0) target = $region5
    $region4: #{tpu_custom_call.1} parent=1 // pred_region
      _
    $region5: #{tpu_custom_call.1} parent=1 // pred_fallthru
      _
    // Predicated region
    $region6: #{tpu_custom_call.1} parent=1 // pred_check
      _
    $region7: #{tpu_custom_call.1} parent=1 // pred_check_branch
      %17 = sbr.rel (0) target = $region9
    $region8: #{tpu_custom_call.1} parent=1 // pred_region
      _
    $region9: #{tpu_custom_call.1} parent=1 // pred_fallthru
      _
    // Predicated region
    $region10: #{tpu_custom_call.1} parent=1 // pred_check
      _
    $region11: #{tpu_custom_call.1} parent=1 // pred_check_branch
      %19 = sbr.rel (0) target = $region13
    $region12: #{tpu_custom_call.1} parent=1 // pred_region
      _
    $region13: #{tpu_custom_call.1} parent=1 // pred_fallthru
      _
    // Predicated region
    $region14: #{tpu_custom_call.1} parent=1 // pred_check
      _
    $region15: #{tpu_custom_call.1} parent=1 // pred_check_branch
      %21 = sbr.rel (0) target = $region17
    $region16: #{tpu_custom_call.1} parent=1 // pred_region
      _
    $region17: #{tpu_custom_call.1} parent=1 // pred_fallthru
      _
    // Predicated region
    $region18: #{tpu_custom_call.1} parent=1 // pred_check
      _
    $region19: #{tpu_custom_call.1} parent=1 // pred_check_branch
      %23 = sbr.rel (0) target = $region21
    $region20: #{tpu_custom_call.1} parent=1 // pred_region
      _
    $region21: #{tpu_custom_call.1} parent=1 // pred_fallthru
      _
    // Predicated region
    $region22: #{tpu_custom_call.1} parent=1 // pred_check
      _
    $region23: #{tpu_custom_call.1} parent=1 // pred_check_branch
      %25 = sbr.rel (0) target = $region25
    $region24: #{tpu_custom_call.1} parent=1 // pred_region
      _
    $region25: #{tpu_custom_call.1} parent=1 // pred_fallthru
      _
    // Predicated region
    $region26: #{tpu_custom_call.1} parent=1 // pred_check
      _
    $region27: #{tpu_custom_call.1} parent=1 // pred_check_branch
      %27 = sbr.rel (0) target = $region29
    $region28: #{tpu_custom_call.1} parent=1 // pred_region
      _
    $region29: #{tpu_custom_call.1} parent=1 // pred_fallthru
      _
    // Predicated region
    $region30: #{tpu_custom_call.1} parent=1 // pred_check
      _
    $region31: #{tpu_custom_call.1} parent=1 // pred_check_branch
      %29 = sbr.rel (0) target = $region33
    $region32: #{tpu_custom_call.1} parent=1 // pred_region
      _
    $region33: #{tpu_custom_call.1} parent=1 // pred_fallthru
      _
    %v31 = vld [vmem:[%s0] sm:$0xf]
    %v32 = vld [vmem:[%s0 + $0x4] sm:$0xf]
    %v33 = vld [vmem:[%s1] sm:$0xf]
    %v34 = vld [vmem:[%s1 + $0x4] sm:$0xf]
    %v37 = vunpack.c.l.b16 %v33
    %v38 = vunpack.c.l.b16 %v34
    %v39 = vpack.c.b16 %v38, %v37
    %v42 = vunpack.c.l.b16 %v31
    %v43 = vunpack.c.l.b16 %v32
    %v44 = vpack.c.b16 %v43, %v42
    %vm46 = vcmask 130048
    %v48 = vsel %vm46, %v39, 0
    %50 = vmatprep.subr.bf16.mxu0 0
    %51 = vmatpush1.bf16.msra.mxu0 %v44
    %52 = vmatprep.subr.bf16.mxu0 0
    %53 = vmatpush1.bf16.msra.mxu0 0
    %54 = vmatprep.subr.bf16.mxu0 0
    %55 = vmatpush1.bf16.msra.mxu0 0
    %56 = vmatprep.subr.bf16.mxu0 0
    %57 = vmatpush1.bf16.msra.mxu0 0
    %58 = vmatprep.subr.bf16.mxu0 0
    %59 = vmatpush1.bf16.msra.mxu0 0
    %60 = vmatprep.subr.bf16.mxu0 0
    %61 = vmatpush1.bf16.msra.mxu0 0
    %62 = vmatprep.subr.bf16.mxu0 0
    %63 = vmatpush1.bf16.msra.mxu0 0
    %64 = vmatprep.subr.bf16.mxu0 0
    %65 = vmatpush1.bf16.msra.mxu0 0
    %66 = vmatprep.subr.bf16.mxu0 0
    %67 = vmatpush1.bf16.msra.mxu0 0
    %68 = vmatprep.subr.bf16.mxu0 0
    %69 = vmatpush1.bf16.msra.mxu0 0
    %70 = vmatprep.subr.bf16.mxu0 0
    %71 = vmatpush1.bf16.msra.mxu0 0
    %72 = vmatprep.subr.bf16.mxu0 0
    %73 = vmatpush1.bf16.msra.mxu0 0
    %74 = vmatprep.subr.bf16.mxu0 0
    %75 = vmatpush1.bf16.msra.mxu0 0
    %76 = vmatprep.subr.bf16.mxu0 0
    %77 = vmatpush1.bf16.msra.mxu0 0
    %78 = vmatprep.subr.bf16.mxu0 0
    %79 = vmatpush1.bf16.msra.mxu0 0
    %80 = vmatprep.subr.bf16.mxu0 0
    %81 = vmatpush1.bf16.msra.mxu0 0
    %82 = vmatprep.mubr.bf16.mxu0 0
    %83 = vmatmul.mubr.bf16.gmra.mrb[0].mxu0 %v48
    %v84 = vpop.f32.mrb[0].mxu0
    %v85 = vadd.f32 0.0, %v84
    %v86 = vpop.f32.mrb[0].mxu0
    %v87 = vpop.f32.mrb[0].mxu0
    %v88 = vadd.f32 0.0, %v87
    %v89 = vpop.f32.mrb[0].mxu0
    %90 = vdwg.mxu0
    %v91 = vld [vmem:[%s7] sm:$0xff]
    %v92 = vld [vmem:[%s7 + $0x8] sm:$0xff]
    %v93 = vpack.c.bf16 %v88, %v85
    %v94 = vld [vmem:[%s2] sm:$0xf]
    %v95 = vld [vmem:[%s2 + $0x4] sm:$0xf]
    %v96 = vld [vmem:[%s2 + $0x8] sm:$0xf]
    %v97 = vld [vmem:[%s2 + $0xc] sm:$0xf]
    %v102 = vunpack.c.l.b16 %v94
    %v103 = vunpack.c.l.b16 %v95
    %v104 = vunpack.c.l.b16 %v96
    %v105 = vunpack.c.l.b16 %v97
    %v106 = vpack.c.b16 %v103, %v102
    %v107 = vpack.c.b16 %v105, %v104
    %vm110 = vcmask 261120
    %v112 = vsel %vm110, %v93, 0
    %114 = vmatprep.subr.bf16.mxu0 0
    %115 = vmatpush1.bf16.msra.mxu0 %v106
    %116 = vmatprep.subr.bf16.mxu0 0
    %117 = vmatpush1.bf16.msra.mxu0 %v107
    %118 = vmatprep.subr.bf16.mxu0 0
    %119 = vmatpush1.bf16.msra.mxu0 0
    %120 = vmatprep.subr.bf16.mxu0 0
    %121 = vmatpush1.bf16.msra.mxu0 0
    %122 = vmatprep.subr.bf16.mxu0 0
    %123 = vmatpush1.bf16.msra.mxu0 0
    %124 = vmatprep.subr.bf16.mxu0 0
    %125 = vmatpush1.bf16.msra.mxu0 0
    %126 = vmatprep.subr.bf16.mxu0 0
    %127 = vmatpush1.bf16.msra.mxu0 0
    %128 = vmatprep.subr.bf16.mxu0 0
    %129 = vmatpush1.bf16.msra.mxu0 0
    %130 = vmatprep.subr.bf16.mxu0 0
    %131 = vmatpush1.bf16.msra.mxu0 0
    %132 = vmatprep.subr.bf16.mxu0 0
    %133 = vmatpush1.bf16.msra.mxu0 0
    %134 = vmatprep.subr.bf16.mxu0 0
    %135 = vmatpush1.bf16.msra.mxu0 0
    %136 = vmatprep.subr.bf16.mxu0 0
    %137 = vmatpush1.bf16.msra.mxu0 0
    %138 = vmatprep.subr.bf16.mxu0 0
    %139 = vmatpush1.bf16.msra.mxu0 0
    %140 = vmatprep.subr.bf16.mxu0 0
    %141 = vmatpush1.bf16.msra.mxu0 0
    %142 = vmatprep.subr.bf16.mxu0 0
    %143 = vmatpush1.bf16.msra.mxu0 0
    %144 = vmatprep.subr.bf16.mxu0 0
    %145 = vmatpush1.bf16.msra.mxu0 0
    %146 = vmatprep.mubr.bf16.mxu0 0
    %147 = vmatmul.mubr.bf16.gmra.mrb[0].mxu0 %v112
    %v148 = vpop.f32.mrb[0].mxu0
    %v149 = vadd.f32 %v91, %v148
    %v150 = vpop.f32.mrb[0].mxu0
    %v151 = vpop.f32.mrb[0].mxu0
    %v152 = vadd.f32 %v92, %v151
    %v153 = vpop.f32.mrb[0].mxu0
    %154 = vdwg.mxu0
    %v155 = vmax.f32 %v149, 0.0
    %v156 = vmax.f32 %v152, 0.0
    %v157 = vpack.c.bf16 %v156, %v155
    %v158 = vld [vmem:[%s3] sm:$0xf]
    %v159 = vld [vmem:[%s3 + $0x4] sm:$0xf]
    %v160 = vld [vmem:[%s3 + $0x8] sm:$0xf]
    %v161 = vld [vmem:[%s3 + $0xc] sm:$0xf]
    %v162 = vld [vmem:[%s3 + $0x10] sm:$0xf]
    %v163 = vld [vmem:[%s3 + $0x14] sm:$0xf]
    %v164 = vld [vmem:[%s3 + $0x18] sm:$0xf]
    %v165 = vld [vmem:[%s3 + $0x1c] sm:$0xf]
    %v166 = vld [vmem:[%s7 + $0x30] sm:$0x1]
    %v167 = vlaneseq
    %v168 = vshrl.u32 %v167, 7
    %v169 = vsub.s32 0, %v168
    %v170 = vrot.slane %v166, %v169
    %v179 = vunpack.c.l.b16 %v158
    %v180 = vunpack.c.l.b16 %v159
    %v181 = vunpack.c.l.b16 %v160
    %v182 = vunpack.c.l.b16 %v161
    %v183 = vunpack.c.l.b16 %v162
    %v184 = vunpack.c.l.b16 %v163
    %v185 = vunpack.c.l.b16 %v164
    %v186 = vunpack.c.l.b16 %v165
    %v187 = vpack.c.b16 %v180, %v179
    %v188 = vpack.c.b16 %v182, %v181
    %v189 = vpack.c.b16 %v184, %v183
    %v190 = vpack.c.b16 %v186, %v185
    %vm195 = vcmask 523264
    %v197 = vsel %vm195, %v157, 0
    %199 = vmatprep.subr.bf16.mxu0 0
    %200 = vmatpush1.bf16.msra.mxu0 %v187
    %201 = vmatprep.subr.bf16.mxu0 0
    %202 = vmatpush1.bf16.msra.mxu0 %v188
    %203 = vmatprep.subr.bf16.mxu0 0
    %204 = vmatpush1.bf16.msra.mxu0 %v189
    %205 = vmatprep.subr.bf16.mxu0 0
    %206 = vmatpush1.bf16.msra.mxu0 %v190
    %207 = vmatprep.subr.bf16.mxu0 0
    %208 = vmatpush1.bf16.msra.mxu0 0
    %209 = vmatprep.subr.bf16.mxu0 0
    %210 = vmatpush1.bf16.msra.mxu0 0
    %211 = vmatprep.subr.bf16.mxu0 0
    %212 = vmatpush1.bf16.msra.mxu0 0
    %213 = vmatprep.subr.bf16.mxu0 0
    %214 = vmatpush1.bf16.msra.mxu0 0
    %215 = vmatprep.subr.bf16.mxu0 0
    %216 = vmatpush1.bf16.msra.mxu0 0
    %217 = vmatprep.subr.bf16.mxu0 0
    %218 = vmatpush1.bf16.msra.mxu0 0
    %219 = vmatprep.subr.bf16.mxu0 0
    %220 = vmatpush1.bf16.msra.mxu0 0
    %221 = vmatprep.subr.bf16.mxu0 0
    %222 = vmatpush1.bf16.msra.mxu0 0
    %223 = vmatprep.subr.bf16.mxu0 0
    %224 = vmatpush1.bf16.msra.mxu0 0
    %225 = vmatprep.subr.bf16.mxu0 0
    %226 = vmatpush1.bf16.msra.mxu0 0
    %227 = vmatprep.subr.bf16.mxu0 0
    %228 = vmatpush1.bf16.msra.mxu0 0
    %229 = vmatprep.subr.bf16.mxu0 0
    %230 = vmatpush1.bf16.msra.mxu0 0
    %231 = vmatprep.mubr.bf16.mxu0 0
    %232 = vmatmul.mubr.bf16.gmra.mrb[0].mxu0 %v197
    %v233 = vpop.f32.mrb[0].mxu0
    %v234 = vadd.f32 %v170, %v233
    %v235 = vpop.f32.mrb[0].mxu0
    %v236 = vpop.f32.mrb[0].mxu0
    %v237 = vadd.f32 %v170, %v236
    %v238 = vpop.f32.mrb[0].mxu0
    %239 = vdwg.mxu0
    %v240 = vsel %vm110, %v234, 0.0
    %v241 = vsel %vm110, %v237, 0.0
    %v242 = vadd.f32 %v240, %v241
    %v243 = vrot.slane %v242, 4
    %v244 = vadd.f32 %v242, %v243
    %v245 = vrot.slane %v244, 2
    %v246 = vadd.f32 %v244, %v245
    %v247 = vrot.slane %v246, 1
    %v248 = vadd.f32 %v246, %v247
    %v249 = vrcp.pop 16.0
    %v250 = vmul.f32 %v248, %v249
    %v251 = vmul.f32 %v234, %v234
    %v252 = vmul.f32 %v237, %v237
    %v253 = vsel %vm110, %v251, 0.0
    %v254 = vsel %vm110, %v252, 0.0
    %v255 = vadd.f32 %v253, %v254
    %v256 = vrot.slane %v255, 4
    %v257 = vadd.f32 %v255, %v256
    %v258 = vrot.slane %v257, 2
    %v259 = vadd.f32 %v257, %v258
    %v260 = vrot.slane %v259, 1
    %v261 = vadd.f32 %v259, %v260
    %v262 = vmul.f32 %v261, %v249
    %v263 = vmul.f32 %v250, %v250
    %v264 = vsub.f32 %v262, %v263
    %v265 = vsub.f32 %v234, %v250
    %v266 = vsub.f32 %v237, %v250
    %v267 = vadd.f32 %v264, 1e-05
    %v268 = vrsqrt.pop %v267
    %v269 = vmul.f32 %v265, %v268
    %v270 = vmul.f32 %v266, %v268
    %v271 = vld [vmem:[%s7 + $0x32] sm:$0x1]
    %v272 = vlaneseq
    %v273 = vshrl.u32 %v272, 7
    %v274 = vsub.s32 0, %v273
    %v275 = vrot.slane %v271, %v274
    %v276 = vmul.f32 %v269, %v275
    %v277 = vmul.f32 %v270, %v275
    %v278 = vld [vmem:[%s7 + $0x34] sm:$0x1]
    %v279 = vlaneseq
    %v280 = vshrl.u32 %v279, 7
    %v281 = vsub.s32 0, %v280
    %v282 = vrot.slane %v278, %v281
    %v283 = vadd.f32 %v276, %v282
    %v284 = vadd.f32 %v277, %v282
    %v285 = vmax.f32 %v283, 0.0
    %v286 = vmax.f32 %v284, 0.0
    %v287 = vpack.c.bf16 %v286, %v285
    %288 = vmatprep.subr.bf16.mxu0 0
    %289 = vmatpush1.bf16.msra.mxu0 %v287
    %290 = vmatprep.subr.bf16.mxu0 0
    %291 = vmatpush1.bf16.msra.mxu0 0
    %292 = vmatprep.subr.bf16.mxu0 0
    %293 = vmatpush1.bf16.msra.mxu0 0
    %294 = vmatprep.subr.bf16.mxu0 0
    %295 = vmatpush1.bf16.msra.mxu0 0
    %296 = vmatprep.subr.bf16.mxu0 0
    %297 = vmatpush1.bf16.msra.mxu0 0
    %298 = vmatprep.subr.bf16.mxu0 0
    %299 = vmatpush1.bf16.msra.mxu0 0
    %300 = vmatprep.subr.bf16.mxu0 0
    %301 = vmatpush1.bf16.msra.mxu0 0
    %302 = vmatprep.subr.bf16.mxu0 0
    %303 = vmatpush1.bf16.msra.mxu0 0
    %304 = vmatprep.subr.bf16.mxu0 0
    %305 = vmatpush1.bf16.msra.mxu0 0
    %306 = vmatprep.subr.bf16.mxu0 0
    %307 = vmatpush1.bf16.msra.mxu0 0
    %308 = vmatprep.subr.bf16.mxu0 0
    %309 = vmatpush1.bf16.msra.mxu0 0
    %310 = vmatprep.subr.bf16.mxu0 0
    %311 = vmatpush1.bf16.msra.mxu0 0
    %312 = vmatprep.subr.bf16.mxu0 0
    %313 = vmatpush1.bf16.msra.mxu0 0
    %314 = vmatprep.subr.bf16.mxu0 0
    %315 = vmatpush1.bf16.msra.mxu0 0
    %316 = vmatprep.subr.bf16.mxu0 0
    %317 = vmatpush1.bf16.msra.mxu0 0
    %318 = vmatprep.subr.bf16.mxu0 0
    %319 = vmatpush1.bf16.msra.mxu0 0
    %320 = vmatprep.mubr.bf16.mxu0 0
    %321 = vmatmul.mubr.bf16.gmra.mrb[0].mxu0 %v48
    %v322 = vpop.f32.mrb[0].mxu0
    %v323 = vadd.f32 0.0, %v322
    %v324 = vpop.f32.mrb[0].mxu0
    %v325 = vpop.f32.mrb[0].mxu0
    %v326 = vadd.f32 0.0, %v325
    %v327 = vpop.f32.mrb[0].mxu0
    %328 = vdwg.mxu0
    %v329 = vld [vmem:[%s7 + $0x10] sm:$0xff]
    %v330 = vld [vmem:[%s7 + $0x18] sm:$0xff]
    %v331 = vpack.c.bf16 %v326, %v323
    %s332 = scalar_lea.vmem %s2, 16
    %v333 = vld [vmem:[%s332] sm:$0xf]
    %v334 = vld [vmem:[%s332 + $0x4] sm:$0xf]
    %v335 = vld [vmem:[%s332 + $0x8] sm:$0xf]
    %v336 = vld [vmem:[%s332 + $0xc] sm:$0xf]
    %v341 = vunpack.c.l.b16 %v333
    %v342 = vunpack.c.l.b16 %v334
    %v343 = vunpack.c.l.b16 %v335
    %v344 = vunpack.c.l.b16 %v336
    %v345 = vpack.c.b16 %v342, %v341
    %v346 = vpack.c.b16 %v344, %v343
    %v350 = vsel %vm110, %v331, 0
    %352 = vmatprep.subr.bf16.mxu0 0
    %353 = vmatpush1.bf16.msra.mxu0 %v345
    %354 = vmatprep.subr.bf16.mxu0 0
    %355 = vmatpush1.bf16.msra.mxu0 %v346
    %356 = vmatprep.subr.bf16.mxu0 0
    %357 = vmatpush1.bf16.msra.mxu0 0
    %358 = vmatprep.subr.bf16.mxu0 0
    %359 = vmatpush1.bf16.msra.mxu0 0
    %360 = vmatprep.subr.bf16.mxu0 0
    %361 = vmatpush1.bf16.msra.mxu0 0
    %362 = vmatprep.subr.bf16.mxu0 0
    %363 = vmatpush1.bf16.msra.mxu0 0
    %364 = vmatprep.subr.bf16.mxu0 0
    %365 = vmatpush1.bf16.msra.mxu0 0
    %366 = vmatprep.subr.bf16.mxu0 0
    %367 = vmatpush1.bf16.msra.mxu0 0
    %368 = vmatprep.subr.bf16.mxu0 0
    %369 = vmatpush1.bf16.msra.mxu0 0
    %370 = vmatprep.subr.bf16.mxu0 0
    %371 = vmatpush1.bf16.msra.mxu0 0
    %372 = vmatprep.subr.bf16.mxu0 0
    %373 = vmatpush1.bf16.msra.mxu0 0
    %374 = vmatprep.subr.bf16.mxu0 0
    %375 = vmatpush1.bf16.msra.mxu0 0
    %376 = vmatprep.subr.bf16.mxu0 0
    %377 = vmatpush1.bf16.msra.mxu0 0
    %378 = vmatprep.subr.bf16.mxu0 0
    %379 = vmatpush1.bf16.msra.mxu0 0
    %380 = vmatprep.subr.bf16.mxu0 0
    %381 = vmatpush1.bf16.msra.mxu0 0
    %382 = vmatprep.subr.bf16.mxu0 0
    %383 = vmatpush1.bf16.msra.mxu0 0
    %384 = vmatprep.mubr.bf16.mxu0 0
    %385 = vmatmul.mubr.bf16.gmra.mrb[0].mxu0 %v350
    %v386 = vpop.f32.mrb[0].mxu0
    %v387 = vadd.f32 %v329, %v386
    %v388 = vpop.f32.mrb[0].mxu0
    %v389 = vpop.f32.mrb[0].mxu0
    %v390 = vadd.f32 %v330, %v389
    %v391 = vpop.f32.mrb[0].mxu0
    %392 = vdwg.mxu0
    %v393 = vmax.f32 %v387, 0.0
    %v394 = vmax.f32 %v390, 0.0
    %v395 = vpack.c.bf16 %v394, %v393
    %s396 = scalar_lea.vmem %s3, 32
    %v397 = vld [vmem:[%s396] sm:$0xf]
    %v398 = vld [vmem:[%s396 + $0x4] sm:$0xf]
    %v399 = vld [vmem:[%s396 + $0x8] sm:$0xf]
    %v400 = vld [vmem:[%s396 + $0xc] sm:$0xf]
    %v401 = vld [vmem:[%s396 + $0x10] sm:$0xf]
    %v402 = vld [vmem:[%s396 + $0x14] sm:$0xf]
    %v403 = vld [vmem:[%s396 + $0x18] sm:$0xf]
    %v404 = vld [vmem:[%s396 + $0x1c] sm:$0xf]
    %v405 = vld [vmem:[%s7 + $0x31] sm:$0x1]
    %v406 = vlaneseq
    %v407 = vshrl.u32 %v406, 7
    %v408 = vsub.s32 0, %v407
    %v409 = vrot.slane %v405, %v408
    %v418 = vunpack.c.l.b16 %v397
    %v419 = vunpack.c.l.b16 %v398
    %v420 = vunpack.c.l.b16 %v399
    %v421 = vunpack.c.l.b16 %v400
    %v422 = vunpack.c.l.b16 %v401
    %v423 = vunpack.c.l.b16 %v402
    %v424 = vunpack.c.l.b16 %v403
    %v425 = vunpack.c.l.b16 %v404
    %v426 = vpack.c.b16 %v419, %v418
    %v427 = vpack.c.b16 %v421, %v420
    %v428 = vpack.c.b16 %v423, %v422
    %v429 = vpack.c.b16 %v425, %v424
    %v435 = vsel %vm195, %v395, 0
    %437 = vmatprep.subr.bf16.mxu0 0
    %438 = vmatpush1.bf16.msra.mxu0 %v426
    %439 = vmatprep.subr.bf16.mxu0 0
    %440 = vmatpush1.bf16.msra.mxu0 %v427
    %441 = vmatprep.subr.bf16.mxu0 0
    %442 = vmatpush1.bf16.msra.mxu0 %v428
    %443 = vmatprep.subr.bf16.mxu0 0
    %444 = vmatpush1.bf16.msra.mxu0 %v429
    %445 = vmatprep.subr.bf16.mxu0 0
    %446 = vmatpush1.bf16.msra.mxu0 0
    %447 = vmatprep.subr.bf16.mxu0 0
    %448 = vmatpush1.bf16.msra.mxu0 0
    %449 = vmatprep.subr.bf16.mxu0 0
    %450 = vmatpush1.bf16.msra.mxu0 0
    %451 = vmatprep.subr.bf16.mxu0 0
    %452 = vmatpush1.bf16.msra.mxu0 0
    %453 = vmatprep.subr.bf16.mxu0 0
    %454 = vmatpush1.bf16.msra.mxu0 0
    %455 = vmatprep.subr.bf16.mxu0 0
    %456 = vmatpush1.bf16.msra.mxu0 0
    %457 = vmatprep.subr.bf16.mxu0 0
    %458 = vmatpush1.bf16.msra.mxu0 0
    %459 = vmatprep.subr.bf16.mxu0 0
    %460 = vmatpush1.bf16.msra.mxu0 0
    %461 = vmatprep.subr.bf16.mxu0 0
    %462 = vmatpush1.bf16.msra.mxu0 0
    %463 = vmatprep.subr.bf16.mxu0 0
    %464 = vmatpush1.bf16.msra.mxu0 0
    %465 = vmatprep.subr.bf16.mxu0 0
    %466 = vmatpush1.bf16.msra.mxu0 0
    %467 = vmatprep.subr.bf16.mxu0 0
    %468 = vmatpush1.bf16.msra.mxu0 0
    %469 = vmatprep.mubr.bf16.mxu0 0
    %470 = vmatmul.mubr.bf16.gmra.mrb[0].mxu0 %v435
    %v471 = vpop.f32.mrb[0].mxu0
    %v472 = vadd.f32 %v409, %v471
    %v473 = vpop.f32.mrb[0].mxu0
    %v474 = vpop.f32.mrb[0].mxu0
    %v475 = vadd.f32 %v409, %v474
    %v476 = vpop.f32.mrb[0].mxu0
    %477 = vdwg.mxu0
    %v478 = vsel %vm110, %v472, 0.0
    %v479 = vsel %vm110, %v475, 0.0
    %v480 = vadd.f32 %v478, %v479
    %v481 = vrot.slane %v480, 4
    %v482 = vadd.f32 %v480, %v481
    %v483 = vrot.slane %v482, 2
    %v484 = vadd.f32 %v482, %v483
    %v485 = vrot.slane %v484, 1
    %v486 = vadd.f32 %v484, %v485
    %v487 = vmul.f32 %v486, %v249
    %v488 = vmul.f32 %v472, %v472
    %v489 = vmul.f32 %v475, %v475
    %v490 = vsel %vm110, %v488, 0.0
    %v491 = vsel %vm110, %v489, 0.0
    %v492 = vadd.f32 %v490, %v491
    %v493 = vrot.slane %v492, 4
    %v494 = vadd.f32 %v492, %v493
    %v495 = vrot.slane %v494, 2
    %v496 = vadd.f32 %v494, %v495
    %v497 = vrot.slane %v496, 1
    %v498 = vadd.f32 %v496, %v497
    %v499 = vmul.f32 %v498, %v249
    %v500 = vmul.f32 %v487, %v487
    %v501 = vsub.f32 %v499, %v500
    %v502 = vsub.f32 %v472, %v487
    %v503 = vsub.f32 %v475, %v487
    %v504 = vadd.f32 %v501, 1e-05
    %v505 = vrsqrt.pop %v504
    %v506 = vmul.f32 %v502, %v505
    %v507 = vmul.f32 %v503, %v505
    %v508 = vld [vmem:[%s7 + $0x33] sm:$0x1]
    %v509 = vlaneseq
    %v510 = vshrl.u32 %v509, 7
    %v511 = vsub.s32 0, %v510
    %v512 = vrot.slane %v508, %v511
    %v513 = vmul.f32 %v506, %v512
    %v514 = vmul.f32 %v507, %v512
    %v515 = vld [vmem:[%s7 + $0x35] sm:$0x1]
    %v516 = vlaneseq
    %v517 = vshrl.u32 %v516, 7
    %v518 = vsub.s32 0, %v517
    %v519 = vrot.slane %v515, %v518
    %v520 = vadd.f32 %v513, %v519
    %v521 = vadd.f32 %v514, %v519
    %v522 = vpack.c.bf16 %v521, %v520
    %v523 = vld [vmem:[%s4] sm:$0xf]
    %v524 = vld [vmem:[%s4 + $0x4] sm:$0xf]
    %v525 = vld [vmem:[%s4 + $0x8] sm:$0xf]
    %v526 = vld [vmem:[%s4 + $0xc] sm:$0xf]
    %v531 = vunpack.c.l.b16 %v523
    %v532 = vunpack.c.l.b16 %v524
    %v533 = vunpack.c.l.b16 %v525
    %v534 = vunpack.c.l.b16 %v526
    %v535 = vpack.c.b16 %v532, %v531
    %v536 = vpack.c.b16 %v534, %v533
    %v540 = vsel %vm110, %v522, 0
    %542 = vmatprep.subr.bf16.mxu0 0
    %543 = vmatpush1.bf16.msra.mxu0 %v535
    %544 = vmatprep.subr.bf16.mxu0 0
    %545 = vmatpush1.bf16.msra.mxu0 %v536
    %546 = vmatprep.subr.bf16.mxu0 0
    %547 = vmatpush1.bf16.msra.mxu0 0
    %548 = vmatprep.subr.bf16.mxu0 0
    %549 = vmatpush1.bf16.msra.mxu0 0
    %550 = vmatprep.subr.bf16.mxu0 0
    %551 = vmatpush1.bf16.msra.mxu0 0
    %552 = vmatprep.subr.bf16.mxu0 0
    %553 = vmatpush1.bf16.msra.mxu0 0
    %554 = vmatprep.subr.bf16.mxu0 0
    %555 = vmatpush1.bf16.msra.mxu0 0
    %556 = vmatprep.subr.bf16.mxu0 0
    %557 = vmatpush1.bf16.msra.mxu0 0
    %558 = vmatprep.subr.bf16.mxu0 0
    %559 = vmatpush1.bf16.msra.mxu0 0
    %560 = vmatprep.subr.bf16.mxu0 0
    %561 = vmatpush1.bf16.msra.mxu0 0
    %562 = vmatprep.subr.bf16.mxu0 0
    %563 = vmatpush1.bf16.msra.mxu0 0
    %564 = vmatprep.subr.bf16.mxu0 0
    %565 = vmatpush1.bf16.msra.mxu0 0
    %566 = vmatprep.subr.bf16.mxu0 0
    %567 = vmatpush1.bf16.msra.mxu0 0
    %568 = vmatprep.subr.bf16.mxu0 0
    %569 = vmatpush1.bf16.msra.mxu0 0
    %570 = vmatprep.subr.bf16.mxu0 0
    %571 = vmatpush1.bf16.msra.mxu0 0
    %572 = vmatprep.subr.bf16.mxu0 0
    %573 = vmatpush1.bf16.msra.mxu0 0
    %574 = vmatprep.mubr.bf16.mxu0 0
    %575 = vmatmul.mubr.bf16.gmra.mrb[0].mxu0 %v540
    %v576 = vpop.f32.mrb[0].mxu0
    %v577 = vadd.f32 0.0, %v576
    %v578 = vpop.f32.mrb[0].mxu0
    %v579 = vpop.f32.mrb[0].mxu0
    %v580 = vadd.f32 0.0, %v579
    %v581 = vpop.f32.mrb[0].mxu0
    %582 = vdwg.mxu0
    %v583 = vld [vmem:[%s5] sm:$0xf]
    %v584 = vld [vmem:[%s5 + $0x4] sm:$0xf]
    %v585 = vpack.c.bf16 %v580, %v577
    %v586 = vld [vmem:[%s7 + $0x36] sm:$0x1]
    %v587 = vlaneseq
    %v588 = vshrl.u32 %v587, 7
    %v589 = vsub.s32 0, %v588
    %v590 = vrot.slane %v586, %v589
    %v593 = vunpack.c.l.b16 %v583
    %v594 = vunpack.c.l.b16 %v584
    %v595 = vpack.c.b16 %v594, %v593
    %v597 = vsel %vm46, %v595, 0
    %599 = vmatprep.subr.bf16.mxu0 0
    %600 = vmatpush1.bf16.msra.mxu0 %v585
    %601 = vmatprep.subr.bf16.mxu0 0
    %602 = vmatpush1.bf16.msra.mxu0 0
    %603 = vmatprep.subr.bf16.mxu0 0
    %604 = vmatpush1.bf16.msra.mxu0 0
    %605 = vmatprep.subr.bf16.mxu0 0
    %606 = vmatpush1.bf16.msra.mxu0 0
    %607 = vmatprep.subr.bf16.mxu0 0
    %608 = vmatpush1.bf16.msra.mxu0 0
    %609 = vmatprep.subr.bf16.mxu0 0
    %610 = vmatpush1.bf16.msra.mxu0 0
    %611 = vmatprep.subr.bf16.mxu0 0
    %612 = vmatpush1.bf16.msra.mxu0 0
    %613 = vmatprep.subr.bf16.mxu0 0
    %614 = vmatpush1.bf16.msra.mxu0 0
    %615 = vmatprep.subr.bf16.mxu0 0
    %616 = vmatpush1.bf16.msra.mxu0 0
    %617 = vmatprep.subr.bf16.mxu0 0
    %618 = vmatpush1.bf16.msra.mxu0 0
    %619 = vmatprep.subr.bf16.mxu0 0
    %620 = vmatpush1.bf16.msra.mxu0 0
    %621 = vmatprep.subr.bf16.mxu0 0
    %622 = vmatpush1.bf16.msra.mxu0 0
    %623 = vmatprep.subr.bf16.mxu0 0
    %624 = vmatpush1.bf16.msra.mxu0 0
    %625 = vmatprep.subr.bf16.mxu0 0
    %626 = vmatpush1.bf16.msra.mxu0 0
    %627 = vmatprep.subr.bf16.mxu0 0
    %628 = vmatpush1.bf16.msra.mxu0 0
    %629 = vmatprep.subr.bf16.mxu0 0
    %630 = vmatpush1.bf16.msra.mxu0 0
    %631 = vmatprep.mubr.bf16.mxu0 0
    %632 = vmatmul.mubr.bf16.gmra.mrb[0].mxu0 %v597
    %v633 = vpop.f32.mrb[0].mxu0
    %v634 = vadd.f32 %v590, %v633
    %v635 = vpop.f32.mrb[0].mxu0
    %v636 = vpop.f32.mrb[0].mxu0
    %v637 = vadd.f32 %v590, %v636
    %v638 = vpop.f32.mrb[0].mxu0
    %639 = vdwg.mxu0
    %v640 = vld [vmem:[%s7 + $0x20] sm:$0xff]
    %v641 = vld [vmem:[%s7 + $0x28] sm:$0xff]
    %v642 = vadd.f32 %v634, %v640
    %v643 = vadd.f32 %v637, %v641
    %646 = vrot.lane.b32.xlu0 %v642, 127
    %v647 = vpop.permute.xlu0 %646
    %648 = vrot.lane.b32.xlu0 %v643, 127
    %v649 = vpop.permute.xlu0 %648
    %vm652 = vcmp.ge.f32.partialorder %v642, %v647
    %vm653 = vcmp.ge.f32.partialorder %v643, %v649
    %v654 = vsel %vm652, 1, 0
    %v655 = vsel %vm653, 1, 0
    %v656 = vcvt.s32.f32 %v654
    %v657 = vcvt.s32.f32 %v655
    %v658 = vpack.c.bf16 %v657, %v656
    %v659 = vld [vmem:[%s6] sm:$0xf]
    %v660 = vld [vmem:[%s6 + $0x4] sm:$0xf]
    %v663 = vunpack.c.l.b16 %v659
    %v664 = vunpack.c.l.b16 %v660
    %v665 = vpack.c.b16 %v664, %v663
    %v667 = vsel %vm46, %v665, 0
    %669 = vmatprep.subr.bf16.mxu0 0
    %670 = vmatpush1.bf16.msra.mxu0 %v658
    %671 = vmatprep.subr.bf16.mxu0 0
    %672 = vmatpush1.bf16.msra.mxu0 0
    %673 = vmatprep.subr.bf16.mxu0 0
    %674 = vmatpush1.bf16.msra.mxu0 0
    %675 = vmatprep.subr.bf16.mxu0 0
    %676 = vmatpush1.bf16.msra.mxu0 0
    %677 = vmatprep.subr.bf16.mxu0 0
    %678 = vmatpush1.bf16.msra.mxu0 0
    %679 = vmatprep.subr.bf16.mxu0 0
    %680 = vmatpush1.bf16.msra.mxu0 0
    %681 = vmatprep.subr.bf16.mxu0 0
    %682 = vmatpush1.bf16.msra.mxu0 0
    %683 = vmatprep.subr.bf16.mxu0 0
    %684 = vmatpush1.bf16.msra.mxu0 0
    %685 = vmatprep.subr.bf16.mxu0 0
    %686 = vmatpush1.bf16.msra.mxu0 0
    %687 = vmatprep.subr.bf16.mxu0 0
    %688 = vmatpush1.bf16.msra.mxu0 0
    %689 = vmatprep.subr.bf16.mxu0 0
    %690 = vmatpush1.bf16.msra.mxu0 0
    %691 = vmatprep.subr.bf16.mxu0 0
    %692 = vmatpush1.bf16.msra.mxu0 0
    %693 = vmatprep.subr.bf16.mxu0 0
    %694 = vmatpush1.bf16.msra.mxu0 0
    %695 = vmatprep.subr.bf16.mxu0 0
    %696 = vmatpush1.bf16.msra.mxu0 0
    %697 = vmatprep.subr.bf16.mxu0 0
    %698 = vmatpush1.bf16.msra.mxu0 0
    %699 = vmatprep.subr.bf16.mxu0 0
    %700 = vmatpush1.bf16.msra.mxu0 0
    %701 = vmatprep.mubr.bf16.mxu0 0
    %702 = vmatmul.mubr.bf16.gmra.mrb[0].mxu0 %v667
    %v703 = vpop.f32.mrb[0].mxu0
    %v704 = vadd.f32 0.0, %v703
    %v705 = vpop.f32.mrb[0].mxu0
    %v706 = vpop.f32.mrb[0].mxu0
    %v707 = vadd.f32 0.0, %v706
    %v708 = vpop.f32.mrb[0].mxu0
    %709 = vdwg.mxu0
    %v710 = vlaneseq
    %v711 = vand.u32 %v710, 127
    %vm712 = vcmp.eq.s32.totalorder %v711, 0
    %vm713 = vcmp.eq.s32.totalorder %v711, 1
    %v714 = vsub.f32 1.0, %v704
    %v715 = vsub.f32 1.0, %v707
    %717 = vset.pattern.permute.xlu0 0
    %718 = vperm.xlu0 %717, %v714
    %v719 = vpop.permute.xlu0 %718
    %722 = vset.pattern.permute.xlu0 0
    %723 = vperm.xlu0 %722, %v715
    %v724 = vpop.permute.xlu0 %723
    %v726 = vsel %vm713, %v719, 0.0
    %v727 = vsel %vm713, %v724, 0.0
    %729 = vset.pattern.permute.xlu0 0
    %730 = vperm.xlu0 %729, %v704
    %v731 = vpop.permute.xlu0 %730
    %734 = vset.pattern.permute.xlu0 0
    %735 = vperm.xlu0 %734, %v707
    %v736 = vpop.permute.xlu0 %735
    %v738 = vsel %vm712, %v731, %v726
    %v739 = vsel %vm712, %v736, %v727
    %740 = vst [vmem:[#allocation2] sm:$0xff] %v738
    %741 = vst [vmem:[#allocation2 + $0x8] sm:$0xff] %v739
    // Predicated region
    $region34: #{tpu_custom_call.1} parent=1 // pred_check
      _
    $region35: #{tpu_custom_call.1} parent=1 // pred_check_branch
      %743 = sbr.rel (0) target = $region37
    $region36: #{tpu_custom_call.1} parent=1 // pred_region
      %s745 = ssub.s32 256, 256
      %746 = vsyncadd [#allocation3], %s745
      %s747 = sshll.u32 [#allocation2], 4
      %s748 = int_to_ptr.vmem [resolvable:$true] %s747
      %753 = dma.vmem_to_hbm [thread:$0]  %s748, 256, %s8, [#allocation3], 128, 128, 8
    $region37: #{tpu_custom_call.1} parent=1 // pred_fallthru
      _
    // Predicated region
    $region38: #{tpu_custom_call.1} parent=1 // pred_check
      _
    $region39: #{tpu_custom_call.1} parent=1 // pred_check_branch
      %755 = sbr.rel (0) target = $region41
    $region40: #{tpu_custom_call.1} parent=1 // pred_region
      %756 = dma.done [#allocation3], 256
    $region41: #{tpu_custom_call.1} parent=1 // pred_fallthru
      _
    %757 = vsyncpa [#allocation3], 1

</llo_original>
